<compile_context>
chip_gen: v6e
topology: v6e:2x2x1
jax: 0.10.0
libtpu: 0.0.40
codegen_flags: <defaults>
</compile_context>

<pallas_src>
import functools

import jax
import jax.numpy as jnp
from jax import lax
from jax.experimental import pallas as pl
from jax.experimental.pallas import tpu as pltpu

N_BINS = 15
NB_PAD = 128                      # bin axis padded to a full lane width
_VMEM_LIMIT_BYTES = 32 << 20      # explicit scoped VMEM (safe on v5e/v6e/v7x)


def _round_up(x, m):
    return ((x + m - 1) // m) * m


def _pick_tile_n(n, c, itemsize):
    """Row tile sized from C/dtype under the scoped-VMEM budget."""
    c_lane = max(_round_up(c, 128), 128)
    # Double-buffered pipeline bytes per row + rough per-row in-kernel temps.
    per_row = 2 * c_lane * itemsize          # logits blocks (lane-padded)
    per_row += 2 * 128 * 4                   # labels (tn,1) i32 padded to 128 lanes
    per_row += c_lane * 4 + 4 * 128 * 4      # f32 cast of logits + (tn,128) temps
    budget = _VMEM_LIMIT_BYTES // 2          # headroom for compiler scratch/spills
    cap_rows = max(budget // per_row, 8)
    # Amortize per-grid-step overhead: aim for >= ~2 MiB of real logits data.
    target_rows = max((2 << 20) // max(c * itemsize, 1), 8)
    tile = min(cap_rows, max(target_rows, 512))
    tile = max(8, (tile // 8) * 8)
    tile = min(tile, _round_up(n, 8))
    return int(tile)


def _ece_kernel(logits_ref, labels_ref, out_ref, *, n_total, n_bins):
    i = pl.program_id(0)

    logits = logits_ref[...].astype(jnp.float32)          # (tn, C)
    labels = labels_ref[...]                              # (tn, 1) int32
    tn, c = logits.shape

    # confidence = max(softmax) = exp(0) / sum(exp(logits - rowmax))
    row_max = jnp.max(logits, axis=1, keepdims=True)                   # (tn,1)
    denom = jnp.sum(jnp.exp(logits - row_max), axis=1, keepdims=True)  # (tn,1)
    conf = pl.reciprocal(denom, approx=False)                          # (tn,1)

    # prediction = argmax(logits) (first max — matches PyTorch tie semantics)
    col_idx = lax.broadcasted_iota(jnp.int32, (tn, c), 1)
    pred = jnp.min(jnp.where(logits == row_max, col_idx, c),
                   axis=1, keepdims=True)                              # (tn,1)
    acc_f = (pred == labels).astype(jnp.float32)                       # (tn,1)

    # mask rows that are only padding (global row index >= n_total)
    row_idx = lax.broadcasted_iota(jnp.int32, (tn, 1), 0) + i * tn
    valid = (row_idx < n_total).astype(jnp.float32)                    # (tn,1)

    # bin index: conf in (b/n_bins, (b+1)/n_bins]  ->  b = ceil(conf*n_bins)-1,
    # clipped (last bin's upper edge is thus exactly 1.0).
    b = jnp.ceil(conf * float(n_bins)).astype(jnp.int32) - 1
    b = jnp.clip(b, 0, n_bins - 1)                                     # (tn,1)

    lane = lax.broadcasted_iota(jnp.int32, (tn, NB_PAD), 1)
    onehot = (lane == b).astype(jnp.float32)                           # (tn,128)

    # w columns: 0 = count weight, 1 = conf, 2 = accuracy (all masked by valid)
    wcol = lax.broadcasted_iota(jnp.int32, (tn, 8), 1)
    w = jnp.where(wcol == 0, valid,
                  jnp.where(wcol == 1, conf * valid,
                            jnp.where(wcol == 2, acc_f * valid, 0.0)))  # (tn,8)

    # single MXU matmul: (8, tn) x (tn, 128) -> per-bin partial sums
    partials = lax.dot_general(
        w, onehot,
        dimension_numbers=(((0,), (0,)), ((), ())),
        preferred_element_type=jnp.float32)                            # (8,128)

    out_ref[0] = partials


def expected_calibration_error(logits, labels, n_bins=N_BINS, tile_n=None):
    """Pallas implementation of the PyTorch `expected_caibration_error` forward.

    logits: (N, C) float (any float dtype; cast to f32 in-kernel).
    labels: (N,) integer class labels.
    Returns (ece*100, acc*100), each shape (1,) float32.
    """
    n, c = logits.shape
    itemsize = jnp.dtype(logits.dtype).itemsize

    if tile_n is None:
        tile_n = _pick_tile_n(n, c, itemsize)
    tile_n = int(max(8, min(_round_up(tile_n, 8), _round_up(n, 8))))
    n_pad = _round_up(n, tile_n)
    num_tiles = n_pad // tile_n

    if n_pad != n:
        logits = jnp.pad(logits, ((0, n_pad - n), (0, 0)))
        labels = jnp.pad(labels, ((0, n_pad - n),), constant_values=-1)
    labels2d = labels.astype(jnp.int32).reshape(n_pad, 1)

    kernel = functools.partial(_ece_kernel, n_total=n, n_bins=n_bins)

    partials = pl.pallas_call(
        kernel,
        out_shape=jax.ShapeDtypeStruct((num_tiles, 8, NB_PAD), jnp.float32),
        grid=(num_tiles,),
        in_specs=[
            pl.BlockSpec((tile_n, c), lambda i: (i, 0)),   # logits, native dtype
            pl.BlockSpec((tile_n, 1), lambda i: (i, 0)),   # labels column
        ],
        out_specs=pl.BlockSpec((1, 8, NB_PAD), lambda i: (i, 0, 0)),
        compiler_params=pltpu.CompilerParams(
            dimension_semantics=("parallel",),
            vmem_limit_bytes=_VMEM_LIMIT_BYTES),
    )(logits, labels2d)

    # Finalize the 15 bins in plain JAX (cheap; keeps the grid fully parallel).
    sums = jnp.sum(partials, axis=0)                     # (8, 128)
    count = sums[0, :n_bins]
    sum_conf = sums[1, :n_bins]
    sum_acc = sums[2, :n_bins]

    prop = count / float(n)
    nonempty = count > 0.0
    safe = jnp.where(nonempty, count, 1.0)
    avg_conf = sum_conf / safe
    avg_acc = sum_acc / safe
    ece = jnp.sum(jnp.where(nonempty, jnp.abs(avg_conf - avg_acc) * prop, 0.0))
    acc = jnp.sum(jnp.where(nonempty, avg_acc * prop, 0.0))
    return (ece * 100.0).reshape(1), (acc * 100.0).reshape(1)


def _reference(logits, labels, n_bins=N_BINS):
    """Pure-JAX reference mirroring the PyTorch forward."""
    probs = jax.nn.softmax(logits.astype(jnp.float32), axis=1)
    conf = jnp.max(probs, axis=1)
    pred = jnp.argmax(probs, axis=1)
    accs = (pred == labels).astype(jnp.float32)
    boundaries = jnp.linspace(0.0, 1.0, n_bins + 1)
    ece = jnp.zeros(1, jnp.float32)
    acc = jnp.zeros(1, jnp.float32)
    for b in range(n_bins):
        lo, hi = boundaries[b], boundaries[b + 1]
        in_bin = (conf > lo) & (conf <= hi)
        prop = jnp.mean(in_bin.astype(jnp.float32))
        cnt = jnp.sum(in_bin.astype(jnp.float32))
        safe = jnp.where(cnt > 0, cnt, 1.0)
        acc_in = jnp.sum(accs * in_bin) / safe
        conf_in = jnp.sum(conf * in_bin) / safe
        ece = ece + jnp.where(cnt > 0, jnp.abs(conf_in - acc_in) * prop, 0.0)
        acc = acc + jnp.where(cnt > 0, acc_in * prop, 0.0)
    return ece * 100.0, acc * 100.0


if __name__ == "__main__":
    key = jax.random.PRNGKey(0)
    k1, k2, k3, k4 = jax.random.split(key, 4)

    # Case 1: small, auto tile (tile == padded N), f32.
    N, C = 64, 16
    logits = jax.random.normal(k1, (N, C), dtype=jnp.float32) * 2.0
    labels = jax.random.randint(k2, (N,), 0, C, dtype=jnp.int32)
    ece, acc = expected_calibration_error(logits, labels)
    jax.block_until_ready((ece, acc))
    ece_r, acc_r = _reference(logits, labels)
    assert jnp.allclose(ece, ece_r, atol=1e-3), (ece, ece_r)
    assert jnp.allclose(acc, acc_r, atol=1e-3), (acc, acc_r)

    # Case 2: N not a multiple of the tile, multi-tile parallel grid, bf16 input
    # (exercises row masking, per-tile partials + wrapper reduce, in-kernel cast).
    N2, C2 = 77, 16
    logits2 = (jax.random.normal(k3, (N2, C2), dtype=jnp.float32) * 2.0
               ).astype(jnp.bfloat16)
    labels2 = jax.random.randint(k4, (N2,), 0, C2, dtype=jnp.int32)
    ece2, acc2 = expected_calibration_error(logits2, labels2, tile_n=32)
    jax.block_until_ready((ece2, acc2))
    ece2_r, acc2_r = _reference(logits2.astype(jnp.float32), labels2)
    assert jnp.allclose(ece2, ece2_r, atol=5e-2), (ece2, ece2_r)
    assert jnp.allclose(acc2, acc2_r, atol=5e-2), (acc2, acc2_r)

    print("KERNEL_OK")
</pallas_src>

<mosaic_0001>
module attributes {stable_mosaic.version = 11 : i64} {
  func.func @_ece_kernel(%arg0: i32, %arg1: memref<64x16xf32, #tpu.memory_space<vmem>>, %arg2: memref<64x1xi32, #tpu.memory_space<vmem>>, %arg3: memref<1x8x128xf32, #tpu.memory_space<vmem>>) attributes {dimension_semantics = [#tpu.dimension_semantics<parallel>], iteration_bounds = array<i64: 1>, scalar_prefetch = 0 : i64, scratch_operands = 0 : i64, tpu.core_type = #tpu.core_type<tc>, window_params = [{transform_indices = @transform_0, window_bounds = array<i64: 64, 16>}, {transform_indices = @transform_1, window_bounds = array<i64: 64, 1>}, {transform_indices = @transform_2, window_bounds = array<i64: 1, 8, 128>}]} {
    %c0 = arith.constant 0 : index
    %c0_0 = arith.constant 0 : index
    %0 = vector.load %arg1[%c0, %c0_0] : memref<64x16xf32, #tpu.memory_space<vmem>>, vector<64x16xf32>
    %c0_1 = arith.constant 0 : index
    %c0_2 = arith.constant 0 : index
    %1 = vector.load %arg2[%c0_1, %c0_2] : memref<64x1xi32, #tpu.memory_space<vmem>>, vector<64x1xi32>
    %cst = arith.constant dense<0xFF800000> : vector<64xf32>
    %2 = vector.multi_reduction <maximumf>, %0, %cst [1] : vector<64x16xf32> to vector<64xf32>
    %3 = vector.shape_cast %2 : vector<64xf32> to vector<64x1xf32>
    %4 = vector.broadcast %3 : vector<64x1xf32> to vector<64x16xf32>
    %5 = arith.subf %0, %4 : vector<64x16xf32>
    %6 = math.exp %5 : vector<64x16xf32>
    %cst_3 = arith.constant dense<0.000000e+00> : vector<64xf32>
    %7 = vector.multi_reduction <add>, %6, %cst_3 [1] : vector<64x16xf32> to vector<64xf32>
    %8 = vector.shape_cast %7 : vector<64xf32> to vector<64x1xf32>
    %9 = tpu.reciprocal %8 : vector<64x1xf32> -> vector<64x1xf32>
    %10 = tpu.iota {dimensions = array<i32: 1>} : vector<64x16xi32>
    %11 = vector.broadcast %3 : vector<64x1xf32> to vector<64x16xf32>
    %12 = arith.cmpf oeq, %0, %11 : vector<64x16xf32>
    %c16_i32 = arith.constant 16 : i32
    %13 = vector.broadcast %c16_i32 : i32 to vector<64x16xi32>
    %14 = arith.select %12, %10, %13 : vector<64x16xi1>, vector<64x16xi32>
    %cst_4 = arith.constant dense<2147483647> : vector<64xi32>
    %15 = vector.multi_reduction <minsi>, %14, %cst_4 [1] : vector<64x16xi32> to vector<64xi32>
    %16 = vector.shape_cast %15 : vector<64xi32> to vector<64x1xi32>
    %17 = arith.cmpi eq, %16, %1 : vector<64x1xi32>
    %18 = arith.extui %17 : vector<64x1xi1> to vector<64x1xi32>
    %19 = arith.sitofp %18 : vector<64x1xi32> to vector<64x1xf32>
    %20 = tpu.iota {dimensions = array<i32: 0>} : vector<64x1xi32>
    %c64_i32 = arith.constant 64 : i32
    %21 = arith.muli %arg0, %c64_i32 : i32
    %22 = vector.broadcast %21 : i32 to vector<64x1xi32>
    %23 = arith.addi %20, %22 : vector<64x1xi32>
    %c64_i32_5 = arith.constant 64 : i32
    %24 = vector.broadcast %c64_i32_5 : i32 to vector<64x1xi32>
    %25 = arith.cmpi slt, %23, %24 : vector<64x1xi32>
    %26 = arith.extui %25 : vector<64x1xi1> to vector<64x1xi32>
    %27 = arith.sitofp %26 : vector<64x1xi32> to vector<64x1xf32>
    %cst_6 = arith.constant 1.500000e+01 : f32
    %28 = vector.broadcast %cst_6 : f32 to vector<64x1xf32>
    %29 = arith.mulf %9, %28 : vector<64x1xf32>
    %30 = math.ceil %29 : vector<64x1xf32>
    %31 = arith.fptosi %30 : vector<64x1xf32> to vector<64x1xi32>
    %c1_i32 = arith.constant 1 : i32
    %32 = vector.broadcast %c1_i32 : i32 to vector<64x1xi32>
    %33 = arith.subi %31, %32 : vector<64x1xi32>
    %c0_i32 = arith.constant 0 : i32
    %c14_i32 = arith.constant 14 : i32
    %34 = vector.broadcast %c0_i32 : i32 to vector<64x1xi32>
    %35 = arith.maxsi %34, %33 : vector<64x1xi32>
    %36 = vector.broadcast %c14_i32 : i32 to vector<64x1xi32>
    %37 = arith.minsi %36, %35 : vector<64x1xi32>
    %38 = tpu.iota {dimensions = array<i32: 1>} : vector<64x128xi32>
    %39 = vector.broadcast %37 : vector<64x1xi32> to vector<64x128xi32>
    %40 = arith.cmpi eq, %38, %39 : vector<64x128xi32>
    %41 = arith.extui %40 : vector<64x128xi1> to vector<64x128xi32>
    %42 = arith.sitofp %41 : vector<64x128xi32> to vector<64x128xf32>
    %43 = tpu.iota {dimensions = array<i32: 1>} : vector<64x8xi32>
    %c0_i32_7 = arith.constant 0 : i32
    %44 = vector.broadcast %c0_i32_7 : i32 to vector<64x8xi32>
    %45 = arith.cmpi eq, %43, %44 : vector<64x8xi32>
    %c1_i32_8 = arith.constant 1 : i32
    %46 = vector.broadcast %c1_i32_8 : i32 to vector<64x8xi32>
    %47 = arith.cmpi eq, %43, %46 : vector<64x8xi32>
    %48 = arith.mulf %9, %27 : vector<64x1xf32>
    %c2_i32 = arith.constant 2 : i32
    %49 = vector.broadcast %c2_i32 : i32 to vector<64x8xi32>
    %50 = arith.cmpi eq, %43, %49 : vector<64x8xi32>
    %51 = arith.mulf %19, %27 : vector<64x1xf32>
    %cst_9 = arith.constant 0.000000e+00 : f32
    %52 = vector.shape_cast %51 : vector<64x1xf32> to vector<64x1xf32>
    %53 = vector.broadcast %52 : vector<64x1xf32> to vector<64x8xf32>
    %54 = vector.broadcast %cst_9 : f32 to vector<64x8xf32>
    %55 = arith.select %50, %53, %54 : vector<64x8xi1>, vector<64x8xf32>
    %56 = vector.shape_cast %48 : vector<64x1xf32> to vector<64x1xf32>
    %57 = vector.broadcast %56 : vector<64x1xf32> to vector<64x8xf32>
    %58 = arith.select %47, %57, %55 : vector<64x8xi1>, vector<64x8xf32>
    %59 = vector.shape_cast %27 : vector<64x1xf32> to vector<64x1xf32>
    %60 = vector.broadcast %59 : vector<64x1xf32> to vector<64x8xf32>
    %61 = arith.select %45, %60, %58 : vector<64x8xi1>, vector<64x8xf32>
    %cst_10 = arith.constant dense<0.000000e+00> : vector<8x128xf32>
    %62 = tpu.matmul %61, %42, %cst_10 {dimension_numbers = #tpu.dot_dimension_numbers<[0], [0], [1], [1], [0, 1, 1, 1], [], []>} : vector<64x8xf32>, vector<64x128xf32>, vector<8x128xf32> -> vector<8x128xf32>
    %c0_11 = arith.constant 0 : index
    %c0_12 = arith.constant 0 : index
    %c0_13 = arith.constant 0 : index
    %63 = vector.load %arg3[%c0_11, %c0_12, %c0_13] : memref<1x8x128xf32, #tpu.memory_space<vmem>>, vector<1x8x128xf32>
    %64 = vector.shape_cast %63 : vector<1x8x128xf32> to vector<8x128xf32>
    %65 = vector.shape_cast %62 : vector<8x128xf32> to vector<1x8x128xf32>
    tpu.vector_store %arg3[%c0_11, %c0_12, %c0_13], %65 {strides = array<i32>} : memref<1x8x128xf32, #tpu.memory_space<vmem>>, vector<1x8x128xf32>,
    return
  }
  func.func @transform_0(%arg0: i32) -> (i32, i32) {
    %c0_i32 = arith.constant 0 : i32
    %c0_i32_0 = arith.constant 0 : i32
    return %arg0, %c0_i32 : i32, i32
  }
  func.func @transform_1(%arg0: i32) -> (i32, i32) {
    %c0_i32 = arith.constant 0 : i32
    %c0_i32_0 = arith.constant 0 : i32
    return %arg0, %c0_i32 : i32, i32
  }
  func.func @transform_2(%arg0: i32) -> (i32, i32, i32) {
    %c0_i32 = arith.constant 0 : i32
    %c0_i32_0 = arith.constant 0 : i32
    %c0_i32_1 = arith.constant 0 : i32
    return %arg0, %c0_i32, %c0_i32_0 : i32, i32, i32
  }
}

</mosaic_0001>

<llo_original>
// kernel: tpu_custom_call.1
$region0: #{tpu_custom_call.1}
  #allocation0 [shape = 'u32[]', space=smem, size = 0x4, offset = 0x4, fixed_abs, tag = 'smem constant byte address 0x4 - core index']
  #allocation1 [shape = 'u32[144,128]{1,0:T(1,128)}', space=vmem, size = 0x12000, scoped, tag = 'internal scratch']
  %s0 = inlined_call_operand.vmem [shape: f32[64,16], index: 0, kind: input, shape index: {}]
  %s1 = inlined_call_operand.vmem [shape: s32[64,1], index: 1, kind: input, shape index: {}]
  %s2 = inlined_call_operand.hbm [shape: f32[1,8,128], index: 2, kind: output, shape index: {}]
  %s3 = sld [smem:[#allocation0]]
  $region18: #{tpu_custom_call.1} parent=0
    _
  %s5 = ssub.s32 1, %s3
  %s6 = scalar_select 0, %s5, %s3
  $region1: #{tpu_custom_call.1} parent=0
    #allocation2 [shape = 'u8[4096]{0}', space=vmem, size = 0x1000, scoped, tag = 'output window, operand 0, single buffered']
    #allocation3 [shape = 's32[1]{0}', space=sflag, size = 0x4, scoped, tag = 'scoped memory for tpu_custom_call.1']
    %7 = vsyncpa [#allocation3], 0
    // Predicated region
    $region2: #{tpu_custom_call.1} parent=1 // pred_check
      _
    $region3: #{tpu_custom_call.1} parent=1 // pred_check_branch
      %9 = sbr.rel (0) target = $region5
    $region4: #{tpu_custom_call.1} parent=1 // pred_region
      _
    $region5: #{tpu_custom_call.1} parent=1 // pred_fallthru
      _
    // Predicated region
    $region6: #{tpu_custom_call.1} parent=1 // pred_check
      _
    $region7: #{tpu_custom_call.1} parent=1 // pred_check_branch
      %11 = sbr.rel (0) target = $region9
    $region8: #{tpu_custom_call.1} parent=1 // pred_region
      _
    $region9: #{tpu_custom_call.1} parent=1 // pred_fallthru
      _
    %v12 = vld [vmem:[%s0] sm:$0xff]
    %v13 = vld [vmem:[%s0 + $0x8] sm:$0xff]
    %v14 = vld [vmem:[%s0 + $0x10] sm:$0xff]
    %v15 = vld [vmem:[%s0 + $0x18] sm:$0xff]
    %v16 = vld [vmem:[%s0 + $0x20] sm:$0xff]
    %v17 = vld [vmem:[%s0 + $0x28] sm:$0xff]
    %v18 = vld [vmem:[%s0 + $0x30] sm:$0xff]
    %v19 = vld [vmem:[%s0 + $0x38] sm:$0xff]
    %v20 = vld [vmem:[%s1] sm:$0xff]
    %v21 = vld [vmem:[%s1 + $0x8] sm:$0xff]
    %v22 = vld [vmem:[%s1 + $0x10] sm:$0xff]
    %v23 = vld [vmem:[%s1 + $0x18] sm:$0xff]
    %v24 = vld [vmem:[%s1 + $0x20] sm:$0xff]
    %v25 = vld [vmem:[%s1 + $0x28] sm:$0xff]
    %v26 = vld [vmem:[%s1 + $0x30] sm:$0xff]
    %v27 = vld [vmem:[%s1 + $0x38] sm:$0xff]
    %vm28 = vcmask 130048
    %v29 = vsel %vm28, %v12, -inf
    %30 = vmax.xlane.f32.xlu0 %v29
    %v31 = vpop.xlane.xlu0 %30
    %v32 = vsel %vm28, %v13, -inf
    %33 = vmax.xlane.f32.xlu0 %v32
    %v34 = vpop.xlane.xlu0 %33
    %v35 = vsel %vm28, %v14, -inf
    %36 = vmax.xlane.f32.xlu0 %v35
    %v37 = vpop.xlane.xlu0 %36
    %v38 = vsel %vm28, %v15, -inf
    %39 = vmax.xlane.f32.xlu0 %v38
    %v40 = vpop.xlane.xlu0 %39
    %v41 = vsel %vm28, %v16, -inf
    %42 = vmax.xlane.f32.xlu0 %v41
    %v43 = vpop.xlane.xlu0 %42
    %v44 = vsel %vm28, %v17, -inf
    %45 = vmax.xlane.f32.xlu0 %v44
    %v46 = vpop.xlane.xlu0 %45
    %v47 = vsel %vm28, %v18, -inf
    %48 = vmax.xlane.f32.xlu0 %v47
    %v49 = vpop.xlane.xlu0 %48
    %v50 = vsel %vm28, %v19, -inf
    %51 = vmax.xlane.f32.xlu0 %v50
    %v52 = vpop.xlane.xlu0 %51
    %v53 = vsub.f32 %v12, %v31
    %v54 = vsub.f32 %v13, %v34
    %v55 = vsub.f32 %v14, %v37
    %v56 = vsub.f32 %v15, %v40
    %v57 = vsub.f32 %v16, %v43
    %v58 = vsub.f32 %v17, %v46
    %v59 = vsub.f32 %v18, %v49
    %v60 = vsub.f32 %v19, %v52
    %v61 = vmul.f32 %v53, 1.442695
    %v62 = vpow.pop %v61
    %v63 = vmul.f32 %v54, 1.442695
    %v64 = vpow.pop %v63
    %v65 = vmul.f32 %v55, 1.442695
    %v66 = vpow.pop %v65
    %v67 = vmul.f32 %v56, 1.442695
    %v68 = vpow.pop %v67
    %v69 = vmul.f32 %v57, 1.442695
    %v70 = vpow.pop %v69
    %v71 = vmul.f32 %v58, 1.442695
    %v72 = vpow.pop %v71
    %v73 = vmul.f32 %v59, 1.442695
    %v74 = vpow.pop %v73
    %v75 = vmul.f32 %v60, 1.442695
    %v76 = vpow.pop %v75
    %v77 = vsel %vm28, %v62, 0.0
    %78 = vadd.xlane.f32.xlu0 %v77
    %v79 = vpop.xlane.xlu0 %78
    %v80 = vsel %vm28, %v64, 0.0
    %81 = vadd.xlane.f32.xlu0 %v80
    %v82 = vpop.xlane.xlu0 %81
    %v83 = vsel %vm28, %v66, 0.0
    %84 = vadd.xlane.f32.xlu0 %v83
    %v85 = vpop.xlane.xlu0 %84
    %v86 = vsel %vm28, %v68, 0.0
    %87 = vadd.xlane.f32.xlu0 %v86
    %v88 = vpop.xlane.xlu0 %87
    %v89 = vsel %vm28, %v70, 0.0
    %90 = vadd.xlane.f32.xlu0 %v89
    %v91 = vpop.xlane.xlu0 %90
    %v92 = vsel %vm28, %v72, 0.0
    %93 = vadd.xlane.f32.xlu0 %v92
    %v94 = vpop.xlane.xlu0 %93
    %v95 = vsel %vm28, %v74, 0.0
    %96 = vadd.xlane.f32.xlu0 %v95
    %v97 = vpop.xlane.xlu0 %96
    %v98 = vsel %vm28, %v76, 0.0
    %99 = vadd.xlane.f32.xlu0 %v98
    %v100 = vpop.xlane.xlu0 %99
    %v101 = vrcp.pop %v79
    %v102 = vrcp.pop %v82
    %v103 = vrcp.pop %v85
    %v104 = vrcp.pop %v88
    %v105 = vrcp.pop %v91
    %v106 = vrcp.pop %v94
    %v107 = vrcp.pop %v97
    %v108 = vrcp.pop %v100
    %v109 = vlaneseq
    %v110 = vand.u32 %v109, 127
    %vm111 = vcmp.eq.f32.partialorder %v12, %v31
    %vm112 = vcmp.eq.f32.partialorder %v13, %v34
    %vm113 = vcmp.eq.f32.partialorder %v14, %v37
    %vm114 = vcmp.eq.f32.partialorder %v15, %v40
    %vm115 = vcmp.eq.f32.partialorder %v16, %v43
    %vm116 = vcmp.eq.f32.partialorder %v17, %v46
    %vm117 = vcmp.eq.f32.partialorder %v18, %v49
    %vm118 = vcmp.eq.f32.partialorder %v19, %v52
    %v119 = vsel %vm111, %v110, 16
    %v120 = vsel %vm112, %v110, 16
    %v121 = vsel %vm113, %v110, 16
    %v122 = vsel %vm114, %v110, 16
    %v123 = vsel %vm115, %v110, 16
    %v124 = vsel %vm116, %v110, 16
    %v125 = vsel %vm117, %v110, 16
    %v126 = vsel %vm118, %v110, 16
    %v127 = vsel %vm28, %v119, 2147483647
    %v128 = vand.u32 %v127, 65535
    %v129 = vshra.s32 %v127, 16
    %v130 = vcvt.s32.f32 %v128
    %v131 = vcvt.s32.f32 %v129
    %132 = vmin.xlane.f32.xlu0 %v131
    %v133 = vpop.xlane.xlu0 %132
    %vm134 = vcmp.eq.f32.partialorder %v131, %v133
    %v135 = vsel %vm134, %v130, inf
    %136 = vmin.xlane.f32.xlu0 %v135
    %v137 = vpop.xlane.xlu0 %136
    %v138 = vcvt.f32.s32 %v137
    %v139 = vcvt.f32.s32 %v133
    %v140 = vshll.u32 %v139, 16
    %v141 = vadd.s32 %v140, %v138
    %v142 = vsel %vm28, %v120, 2147483647
    %v143 = vand.u32 %v142, 65535
    %v144 = vshra.s32 %v142, 16
    %v145 = vcvt.s32.f32 %v143
    %v146 = vcvt.s32.f32 %v144
    %147 = vmin.xlane.f32.xlu0 %v146
    %v148 = vpop.xlane.xlu0 %147
    %vm149 = vcmp.eq.f32.partialorder %v146, %v148
    %v150 = vsel %vm149, %v145, inf
    %151 = vmin.xlane.f32.xlu0 %v150
    %v152 = vpop.xlane.xlu0 %151
    %v153 = vcvt.f32.s32 %v152
    %v154 = vcvt.f32.s32 %v148
    %v155 = vshll.u32 %v154, 16
    %v156 = vadd.s32 %v155, %v153
    %v157 = vsel %vm28, %v121, 2147483647
    %v158 = vand.u32 %v157, 65535
    %v159 = vshra.s32 %v157, 16
    %v160 = vcvt.s32.f32 %v158
    %v161 = vcvt.s32.f32 %v159
    %162 = vmin.xlane.f32.xlu0 %v161
    %v163 = vpop.xlane.xlu0 %162
    %vm164 = vcmp.eq.f32.partialorder %v161, %v163
    %v165 = vsel %vm164, %v160, inf
    %166 = vmin.xlane.f32.xlu0 %v165
    %v167 = vpop.xlane.xlu0 %166
    %v168 = vcvt.f32.s32 %v167
    %v169 = vcvt.f32.s32 %v163
    %v170 = vshll.u32 %v169, 16
    %v171 = vadd.s32 %v170, %v168
    %v172 = vsel %vm28, %v122, 2147483647
    %v173 = vand.u32 %v172, 65535
    %v174 = vshra.s32 %v172, 16
    %v175 = vcvt.s32.f32 %v173
    %v176 = vcvt.s32.f32 %v174
    %177 = vmin.xlane.f32.xlu0 %v176
    %v178 = vpop.xlane.xlu0 %177
    %vm179 = vcmp.eq.f32.partialorder %v176, %v178
    %v180 = vsel %vm179, %v175, inf
    %181 = vmin.xlane.f32.xlu0 %v180
    %v182 = vpop.xlane.xlu0 %181
    %v183 = vcvt.f32.s32 %v182
    %v184 = vcvt.f32.s32 %v178
    %v185 = vshll.u32 %v184, 16
    %v186 = vadd.s32 %v185, %v183
    %v187 = vsel %vm28, %v123, 2147483647
    %v188 = vand.u32 %v187, 65535
    %v189 = vshra.s32 %v187, 16
    %v190 = vcvt.s32.f32 %v188
    %v191 = vcvt.s32.f32 %v189
    %192 = vmin.xlane.f32.xlu0 %v191
    %v193 = vpop.xlane.xlu0 %192
    %vm194 = vcmp.eq.f32.partialorder %v191, %v193
    %v195 = vsel %vm194, %v190, inf
    %196 = vmin.xlane.f32.xlu0 %v195
    %v197 = vpop.xlane.xlu0 %196
    %v198 = vcvt.f32.s32 %v197
    %v199 = vcvt.f32.s32 %v193
    %v200 = vshll.u32 %v199, 16
    %v201 = vadd.s32 %v200, %v198
    %v202 = vsel %vm28, %v124, 2147483647
    %v203 = vand.u32 %v202, 65535
    %v204 = vshra.s32 %v202, 16
    %v205 = vcvt.s32.f32 %v203
    %v206 = vcvt.s32.f32 %v204
    %207 = vmin.xlane.f32.xlu0 %v206
    %v208 = vpop.xlane.xlu0 %207
    %vm209 = vcmp.eq.f32.partialorder %v206, %v208
    %v210 = vsel %vm209, %v205, inf
    %211 = vmin.xlane.f32.xlu0 %v210
    %v212 = vpop.xlane.xlu0 %211
    %v213 = vcvt.f32.s32 %v212
    %v214 = vcvt.f32.s32 %v208
    %v215 = vshll.u32 %v214, 16
    %v216 = vadd.s32 %v215, %v213
    %v217 = vsel %vm28, %v125, 2147483647
    %v218 = vand.u32 %v217, 65535
    %v219 = vshra.s32 %v217, 16
    %v220 = vcvt.s32.f32 %v218
    %v221 = vcvt.s32.f32 %v219
    %222 = vmin.xlane.f32.xlu0 %v221
    %v223 = vpop.xlane.xlu0 %222
    %vm224 = vcmp.eq.f32.partialorder %v221, %v223
    %v225 = vsel %vm224, %v220, inf
    %226 = vmin.xlane.f32.xlu0 %v225
    %v227 = vpop.xlane.xlu0 %226
    %v228 = vcvt.f32.s32 %v227
    %v229 = vcvt.f32.s32 %v223
    %v230 = vshll.u32 %v229, 16
    %v231 = vadd.s32 %v230, %v228
    %v232 = vsel %vm28, %v126, 2147483647
    %v233 = vand.u32 %v232, 65535
    %v234 = vshra.s32 %v232, 16
    %v235 = vcvt.s32.f32 %v233
    %v236 = vcvt.s32.f32 %v234
    %237 = vmin.xlane.f32.xlu0 %v236
    %v238 = vpop.xlane.xlu0 %237
    %vm239 = vcmp.eq.f32.partialorder %v236, %v238
    %v240 = vsel %vm239, %v235, inf
    %241 = vmin.xlane.f32.xlu0 %v240
    %v242 = vpop.xlane.xlu0 %241
    %v243 = vcvt.f32.s32 %v242
    %v244 = vcvt.f32.s32 %v238
    %v245 = vshll.u32 %v244, 16
    %v246 = vadd.s32 %v245, %v243
    %vm247 = vcmp.eq.s32.totalorder %v141, %v20
    %vm248 = vcmp.eq.s32.totalorder %v156, %v21
    %vm249 = vcmp.eq.s32.totalorder %v171, %v22
    %vm250 = vcmp.eq.s32.totalorder %v186, %v23
    %vm251 = vcmp.eq.s32.totalorder %v201, %v24
    %vm252 = vcmp.eq.s32.totalorder %v216, %v25
    %vm253 = vcmp.eq.s32.totalorder %v231, %v26
    %vm254 = vcmp.eq.s32.totalorder %v246, %v27
    %v255 = vsel %vm247, 1, 0
    %v256 = vsel %vm248, 1, 0
    %v257 = vsel %vm249, 1, 0
    %v258 = vsel %vm250, 1, 0
    %v259 = vsel %vm251, 1, 0
    %v260 = vsel %vm252, 1, 0
    %v261 = vsel %vm253, 1, 0
    %v262 = vsel %vm254, 1, 0
    %v263 = vcvt.s32.f32 %v255
    %v264 = vcvt.s32.f32 %v256
    %v265 = vcvt.s32.f32 %v257
    %v266 = vcvt.s32.f32 %v258
    %v267 = vcvt.s32.f32 %v259
    %v268 = vcvt.s32.f32 %v260
    %v269 = vcvt.s32.f32 %v261
    %v270 = vcvt.s32.f32 %v262
    %v271 = vlaneseq
    %v272 = vshrl.u32 %v271, 7
    %v273 = vadd.s32 %v272, 8
    %v274 = vadd.s32 %v272, 16
    %v275 = vadd.s32 %v272, 24
    %v276 = vadd.s32 %v272, 32
    %v277 = vadd.s32 %v272, 40
    %v278 = vadd.s32 %v272, 48
    %v279 = vadd.s32 %v272, 56
    %s280 = smul.u32 0, 64
    %v281 = vstv %s280
    %v282 = vadd.s32 %v272, %v281
    %v283 = vadd.s32 %v273, %v281
    %v284 = vadd.s32 %v274, %v281
    %v285 = vadd.s32 %v275, %v281
    %v286 = vadd.s32 %v276, %v281
    %v287 = vadd.s32 %v277, %v281
    %v288 = vadd.s32 %v278, %v281
    %v289 = vadd.s32 %v279, %v281
    %vm290 = vcmp.lt.s32.totalorder %v282, 64
    %vm291 = vcmp.lt.s32.totalorder %v283, 64
    %vm292 = vcmp.lt.s32.totalorder %v284, 64
    %vm293 = vcmp.lt.s32.totalorder %v285, 64
    %vm294 = vcmp.lt.s32.totalorder %v286, 64
    %vm295 = vcmp.lt.s32.totalorder %v287, 64
    %vm296 = vcmp.lt.s32.totalorder %v288, 64
    %vm297 = vcmp.lt.s32.totalorder %v289, 64
    %v298 = vsel %vm290, 1, 0
    %v299 = vsel %vm291, 1, 0
    %v300 = vsel %vm292, 1, 0
    %v301 = vsel %vm293, 1, 0
    %v302 = vsel %vm294, 1, 0
    %v303 = vsel %vm295, 1, 0
    %v304 = vsel %vm296, 1, 0
    %v305 = vsel %vm297, 1, 0
    %v306 = vcvt.s32.f32 %v298
    %v307 = vcvt.s32.f32 %v299
    %v308 = vcvt.s32.f32 %v300
    %v309 = vcvt.s32.f32 %v301
    %v310 = vcvt.s32.f32 %v302
    %v311 = vcvt.s32.f32 %v303
    %v312 = vcvt.s32.f32 %v304
    %v313 = vcvt.s32.f32 %v305
    %v314 = vmul.f32 %v101, 15.0
    %v315 = vmul.f32 %v102, 15.0
    %v316 = vmul.f32 %v103, 15.0
    %v317 = vmul.f32 %v104, 15.0
    %v318 = vmul.f32 %v105, 15.0
    %v319 = vmul.f32 %v106, 15.0
    %v320 = vmul.f32 %v107, 15.0
    %v321 = vmul.f32 %v108, 15.0
    %v322 = vceil.f32 %v314
    %v323 = vceil.f32 %v315
    %v324 = vceil.f32 %v316
    %v325 = vceil.f32 %v317
    %v326 = vceil.f32 %v318
    %v327 = vceil.f32 %v319
    %v328 = vceil.f32 %v320
    %v329 = vceil.f32 %v321
    %v330 = vcvt.f32.s32.to.zero.pseudo %v322
    %v331 = vcvt.f32.s32.to.zero.pseudo %v323
    %v332 = vcvt.f32.s32.to.zero.pseudo %v324
    %v333 = vcvt.f32.s32.to.zero.pseudo %v325
    %v334 = vcvt.f32.s32.to.zero.pseudo %v326
    %v335 = vcvt.f32.s32.to.zero.pseudo %v327
    %v336 = vcvt.f32.s32.to.zero.pseudo %v328
    %v337 = vcvt.f32.s32.to.zero.pseudo %v329
    %v338 = vsub.s32 %v330, 1
    %v339 = vsub.s32 %v331, 1
    %v340 = vsub.s32 %v332, 1
    %v341 = vsub.s32 %v333, 1
    %v342 = vsub.s32 %v334, 1
    %v343 = vsub.s32 %v335, 1
    %v344 = vsub.s32 %v336, 1
    %v345 = vsub.s32 %v337, 1
    %vm346 = vcmp.gt.s32.totalorder %v338, 0
    %v347 = vsel %vm346, %v338, 0
    %vm348 = vcmp.gt.s32.totalorder %v339, 0
    %v349 = vsel %vm348, %v339, 0
    %vm350 = vcmp.gt.s32.totalorder %v340, 0
    %v351 = vsel %vm350, %v340, 0
    %vm352 = vcmp.gt.s32.totalorder %v341, 0
    %v353 = vsel %vm352, %v341, 0
    %vm354 = vcmp.gt.s32.totalorder %v342, 0
    %v355 = vsel %vm354, %v342, 0
    %vm356 = vcmp.gt.s32.totalorder %v343, 0
    %v357 = vsel %vm356, %v343, 0
    %vm358 = vcmp.gt.s32.totalorder %v344, 0
    %v359 = vsel %vm358, %v344, 0
    %vm360 = vcmp.gt.s32.totalorder %v345, 0
    %v361 = vsel %vm360, %v345, 0
    %vm362 = vcmp.lt.s32.totalorder %v347, 14
    %v363 = vsel %vm362, %v347, 14
    %vm364 = vcmp.lt.s32.totalorder %v349, 14
    %v365 = vsel %vm364, %v349, 14
    %vm366 = vcmp.lt.s32.totalorder %v351, 14
    %v367 = vsel %vm366, %v351, 14
    %vm368 = vcmp.lt.s32.totalorder %v353, 14
    %v369 = vsel %vm368, %v353, 14
    %vm370 = vcmp.lt.s32.totalorder %v355, 14
    %v371 = vsel %vm370, %v355, 14
    %vm372 = vcmp.lt.s32.totalorder %v357, 14
    %v373 = vsel %vm372, %v357, 14
    %vm374 = vcmp.lt.s32.totalorder %v359, 14
    %v375 = vsel %vm374, %v359, 14
    %vm376 = vcmp.lt.s32.totalorder %v361, 14
    %v377 = vsel %vm376, %v361, 14
    %vm378 = vcmp.eq.s32.totalorder %v110, %v363
    %vm379 = vcmp.eq.s32.totalorder %v110, %v365
    %vm380 = vcmp.eq.s32.totalorder %v110, %v367
    %vm381 = vcmp.eq.s32.totalorder %v110, %v369
    %vm382 = vcmp.eq.s32.totalorder %v110, %v371
    %vm383 = vcmp.eq.s32.totalorder %v110, %v373
    %vm384 = vcmp.eq.s32.totalorder %v110, %v375
    %vm385 = vcmp.eq.s32.totalorder %v110, %v377
    %v386 = vsel %vm378, 1, 0
    %v387 = vsel %vm379, 1, 0
    %v388 = vsel %vm380, 1, 0
    %v389 = vsel %vm381, 1, 0
    %v390 = vsel %vm382, 1, 0
    %v391 = vsel %vm383, 1, 0
    %v392 = vsel %vm384, 1, 0
    %v393 = vsel %vm385, 1, 0
    %v394 = vcvt.s32.f32 %v386
    %v395 = vcvt.s32.f32 %v387
    %v396 = vcvt.s32.f32 %v388
    %v397 = vcvt.s32.f32 %v389
    %v398 = vcvt.s32.f32 %v390
    %v399 = vcvt.s32.f32 %v391
    %v400 = vcvt.s32.f32 %v392
    %v401 = vcvt.s32.f32 %v393
    %vm402 = vcmp.eq.s32.totalorder %v110, 0
    %vm403 = vcmp.eq.s32.totalorder %v110, 1
    %v404 = vmul.f32 %v101, %v306
    %v405 = vmul.f32 %v102, %v307
    %v406 = vmul.f32 %v103, %v308
    %v407 = vmul.f32 %v104, %v309
    %v408 = vmul.f32 %v105, %v310
    %v409 = vmul.f32 %v106, %v311
    %v410 = vmul.f32 %v107, %v312
    %v411 = vmul.f32 %v108, %v313
    %vm412 = vcmp.eq.s32.totalorder %v110, 2
    %v413 = vmul.f32 %v263, %v306
    %v414 = vmul.f32 %v264, %v307
    %v415 = vmul.f32 %v265, %v308
    %v416 = vmul.f32 %v266, %v309
    %v417 = vmul.f32 %v267, %v310
    %v418 = vmul.f32 %v268, %v311
    %v419 = vmul.f32 %v269, %v312
    %v420 = vmul.f32 %v270, %v313
    %422 = vset.pattern.permute.xlu0 0
    %423 = vperm.xlu0 %422, %v413
    %v424 = vpop.permute.xlu0 %423
    %427 = vset.pattern.permute.xlu0 0
    %428 = vperm.xlu0 %427, %v414
    %v429 = vpop.permute.xlu0 %428
    %432 = vset.pattern.permute.xlu0 0
    %433 = vperm.xlu0 %432, %v415
    %v434 = vpop.permute.xlu0 %433
    %437 = vset.pattern.permute.xlu0 0
    %438 = vperm.xlu0 %437, %v416
    %v439 = vpop.permute.xlu0 %438
    %442 = vset.pattern.permute.xlu0 0
    %443 = vperm.xlu0 %442, %v417
    %v444 = vpop.permute.xlu0 %443
    %447 = vset.pattern.permute.xlu0 0
    %448 = vperm.xlu0 %447, %v418
    %v449 = vpop.permute.xlu0 %448
    %452 = vset.pattern.permute.xlu0 0
    %453 = vperm.xlu0 %452, %v419
    %v454 = vpop.permute.xlu0 %453
    %457 = vset.pattern.permute.xlu0 0
    %458 = vperm.xlu0 %457, %v420
    %v459 = vpop.permute.xlu0 %458
    %v461 = vsel %vm412, %v424, 0.0
    %v462 = vsel %vm412, %v429, 0.0
    %v463 = vsel %vm412, %v434, 0.0
    %v464 = vsel %vm412, %v439, 0.0
    %v465 = vsel %vm412, %v444, 0.0
    %v466 = vsel %vm412, %v449, 0.0
    %v467 = vsel %vm412, %v454, 0.0
    %v468 = vsel %vm412, %v459, 0.0
    %v469 = vsel %vm403, %v404, %v461
    %v470 = vsel %vm403, %v405, %v462
    %v471 = vsel %vm403, %v406, %v463
    %v472 = vsel %vm403, %v407, %v464
    %v473 = vsel %vm403, %v408, %v465
    %v474 = vsel %vm403, %v409, %v466
    %v475 = vsel %vm403, %v410, %v467
    %v476 = vsel %vm403, %v411, %v468
    %v477 = vsel %vm402, %v306, %v469
    %v478 = vsel %vm402, %v307, %v470
    %v479 = vsel %vm402, %v308, %v471
    %v480 = vsel %vm402, %v309, %v472
    %v481 = vsel %vm402, %v310, %v473
    %v482 = vsel %vm402, %v311, %v474
    %v483 = vsel %vm402, %v312, %v475
    %v484 = vsel %vm402, %v313, %v476
    %485 = vxpose.xlu0.b32.start [1/16] %v477, 128
    %486 = vxpose.xlu0.b32.cont [2/16] %v478, 128
    %487 = vxpose.xlu0.b32.cont [3/16] %v479, 128
    %488 = vxpose.xlu0.b32.cont [4/16] %v480, 128
    %489 = vxpose.xlu0.b32.cont [5/16] %v481, 128
    %490 = vxpose.xlu0.b32.cont [6/16] %v482, 128
    %491 = vxpose.xlu0.b32.cont [7/16] %v483, 128
    %492 = vxpose.xlu0.b32.cont [8/16] %v484, 128
    %493 = vxpose.xlu0.b32.cont [9/16] 0.0, 128
    %494 = vxpose.xlu0.b32.cont [10/16] 0.0, 128
    %495 = vxpose.xlu0.b32.cont [11/16] 0.0, 128
    %496 = vxpose.xlu0.b32.cont [12/16] 0.0, 128
    %497 = vxpose.xlu0.b32.cont [13/16] 0.0, 128
    %498 = vxpose.xlu0.b32.cont [14/16] 0.0, 128
    %499 = vxpose.xlu0.b32.cont [15/16] 0.0, 128
    %500 = vxpose.xlu0.b32.end [16/16] 0.0, 128
    %v501 = vpop.trf.xlu0
    %v502 = vpop.trf.xlu0
    %v503 = vpop.trf.xlu0
    %v504 = vpop.trf.xlu0
    %v505 = vpop.trf.xlu0
    %v506 = vpop.trf.xlu0
    %v507 = vpop.trf.xlu0
    %v508 = vpop.trf.xlu0
    %v509 = vpop.trf.xlu0
    %v510 = vpop.trf.xlu0
    %v511 = vpop.trf.xlu0
    %v512 = vpop.trf.xlu0
    %v513 = vpop.trf.xlu0
    %v514 = vpop.trf.xlu0
    %v515 = vpop.trf.xlu0
    %v516 = vpop.trf.xlu0
    %vm517 = vcmask 523264
    %v519 = vsel %vm517, %v501, 0
    %521 = vmatprep.subr.mxu0 0.0
    %522 = vmatpush1.msra.mxu0 0.0
    %523 = vmatprep.subr.mxu0 0.0
    %524 = vmatpush1.msra.mxu0 0.0
    %525 = vmatprep.subr.mxu0 0.0
    %526 = vmatpush1.msra.mxu0 0.0
    %527 = vmatprep.subr.mxu0 0.0
    %528 = vmatpush1.msra.mxu0 0.0
    %529 = vmatprep.subr.mxu0 0.0
    %530 = vmatpush1.msra.mxu0 0.0
    %531 = vmatprep.subr.mxu0 0.0
    %532 = vmatpush1.msra.mxu0 0.0
    %533 = vmatprep.subr.mxu0 0.0
    %534 = vmatpush1.msra.mxu0 0.0
    %535 = vmatprep.subr.mxu0 0.0
    %536 = vmatpush1.msra.mxu0 0.0
    %537 = vmatprep.subr.mxu0 0.0
    %538 = vmatpush1.msra.mxu0 %v401
    %539 = vmatprep.subr.mxu0 0.0
    %540 = vmatpush1.msra.mxu0 %v400
    %541 = vmatprep.subr.mxu0 0.0
    %542 = vmatpush1.msra.mxu0 %v399
    %543 = vmatprep.subr.mxu0 0.0
    %544 = vmatpush1.msra.mxu0 %v398
    %545 = vmatprep.subr.mxu0 0.0
    %546 = vmatpush1.msra.mxu0 %v397
    %547 = vmatprep.subr.mxu0 0.0
    %548 = vmatpush1.msra.mxu0 %v396
    %549 = vmatprep.subr.mxu0 0.0
    %550 = vmatpush1.msra.mxu0 %v395
    %551 = vmatprep.subr.mxu0 0.0
    %552 = vmatpush1.msra.mxu0 %v394
    %553 = vmatprep.subr.mxu0 0.0
    %554 = vmatpush2.msra.mxu0 0.0
    %555 = vmatprep.subr.mxu0 0.0
    %556 = vmatpush2.msra.mxu0 0.0
    %557 = vmatprep.subr.mxu0 0.0
    %558 = vmatpush2.msra.mxu0 0.0
    %559 = vmatprep.subr.mxu0 0.0
    %560 = vmatpush2.msra.mxu0 0.0
    %561 = vmatprep.subr.mxu0 0.0
    %562 = vmatpush2.msra.mxu0 0.0
    %563 = vmatprep.subr.mxu0 0.0
    %564 = vmatpush2.msra.mxu0 0.0
    %565 = vmatprep.subr.mxu0 0.0
    %566 = vmatpush2.msra.mxu0 0.0
    %567 = vmatprep.subr.mxu0 0.0
    %568 = vmatpush2.msra.mxu0 0.0
    %569 = vmatprep.subr.mxu0 0.0
    %570 = vmatpush2.msra.mxu0 0.0
    %571 = vmatprep.subr.mxu0 0.0
    %572 = vmatpush2.msra.mxu0 0.0
    %573 = vmatprep.subr.mxu0 0.0
    %574 = vmatpush2.msra.mxu0 0.0
    %575 = vmatprep.subr.mxu0 0.0
    %576 = vmatpush2.msra.mxu0 0.0
    %577 = vmatprep.subr.mxu0 0.0
    %578 = vmatpush2.msra.mxu0 0.0
    %579 = vmatprep.subr.mxu0 0.0
    %580 = vmatpush2.msra.mxu0 0.0
    %581 = vmatprep.subr.mxu0 0.0
    %582 = vmatpush2.msra.mxu0 0.0
    %583 = vmatprep.subr.mxu0 0.0
    %584 = vmatpush2.msra.mxu0 0.0
    %585 = vmatprep.mubr.f32.mxu0 0.0
    %586 = vmatmul.mubr.f32.gmra.mxu0 %v519
    %v587 = vpop.f32.mrf.mxu0
    %v588 = vadd.f32 0.0, %v587
    %v589 = vpop.f32.mrf.mxu0
    %590 = vdwg.mxu0
    %591 = vst [vmem:[#allocation2] sm:$0xff] %v588
    // Predicated region
    $region10: #{tpu_custom_call.1} parent=1 // pred_check
      _
    $region11: #{tpu_custom_call.1} parent=1 // pred_check_branch
      %593 = sbr.rel (0) target = $region13
    $region12: #{tpu_custom_call.1} parent=1 // pred_region
      %s595 = ssub.s32 128, 128
      %596 = vsyncadd [#allocation3], %s595
      %s598 = sshll.u32 [#allocation2], 4
      %s599 = int_to_ptr.vmem [resolvable:$true] %s598
      %601 = dma.vmem_to_hbm [thread:$0]  %s599, 128, %s2, [#allocation3]
    $region13: #{tpu_custom_call.1} parent=1 // pred_fallthru
      _
    // Predicated region
    $region14: #{tpu_custom_call.1} parent=1 // pred_check
      _
    $region15: #{tpu_custom_call.1} parent=1 // pred_check_branch
      %603 = sbr.rel (0) target = $region17
    $region16: #{tpu_custom_call.1} parent=1 // pred_region
      %604 = dma.done [#allocation3], 128
    $region17: #{tpu_custom_call.1} parent=1 // pred_fallthru
      _
    %605 = vsyncpa [#allocation3], 1

</llo_original>
